<compile_context>
chip_gen: v6e
topology: v6e:2x2x1
jax: 0.10.0
libtpu: 0.0.40
codegen_flags: <defaults>
</compile_context>

<pallas_src>
from functools import partial

import jax
import jax.numpy as jnp
from jax.experimental import pallas as pl
from jax.experimental.pallas import tpu as pltpu


def _round_up(n, m):
    return ((n + m - 1) // m) * m


def _dtype_bytes(dt):
    return jnp.dtype(dt).itemsize


def _vmem_capacity_bytes():
    """Per-core VMEM capacity; conservative 64 MiB (v7x) if the query fails."""
    try:
        info = pltpu.get_tpu_info()
        cap = getattr(info, "vmem_capacity_bytes", None)
        if cap:
            return int(cap)
    except Exception:
        pass
    return 64 * 2**20


# ---------------------------------------------------------------------------
# Kernels
# ---------------------------------------------------------------------------

def dora_fused_kernel(w_ref, a_ref, b_ref, scale_ref, bias_ref, x_ref,
                      out_ref, acc_ref):
    """Fused DoRA forward for one (batch-tile, I-slab) grid point (n_b == 1)."""
    k = pl.program_id(1)

    # lora slab: (alpha*A) @ B[:, k-slab]   (O_pad, TI); alpha pre-folded into A.
    lora = jnp.dot(a_ref[...], b_ref[...], preferred_element_type=jnp.float32)
    adapted = w_ref[...].astype(jnp.float32) + lora
    # scale = m / ||W + alpha*A@B||_col was precomputed analytically from small
    # per-column stats; only one VPU slab pass remains for the normalization.
    calc_w = (adapted * scale_ref[...]).astype(x_ref.dtype)

    # y_tile += x_tile @ calc_w.T : contract last dims of both operands
    # (native trans-RHS MXU form, no vxpose / no materialized transpose).
    part = jax.lax.dot_general(
        x_ref[...], calc_w,
        dimension_numbers=(((1,), (1,)), ((), ())),
        preferred_element_type=jnp.float32,
    )

    @pl.when(k == 0)
    def _first():
        acc_ref[...] = part          # no zero-init + add on the first slab

    @pl.when(k > 0)
    def _accum():
        acc_ref[...] += part

    @pl.when(k == pl.num_programs(1) - 1)
    def _finalize():
        out_ref[...] = (acc_ref[...] +
                        bias_ref[...].astype(jnp.float32)).astype(out_ref.dtype)


def dora_calc_w_kernel(w_ref, a_ref, b_ref, scale_ref, cw_ref):
    """Derive the normalized DoRA weight slab once (used when n_b > 1)."""
    lora = jnp.dot(a_ref[...], b_ref[...], preferred_element_type=jnp.float32)
    adapted = w_ref[...].astype(jnp.float32) + lora
    cw_ref[...] = (adapted * scale_ref[...]).astype(cw_ref.dtype)


def linear_kernel(cw_ref, bias_ref, x_ref, out_ref, acc_ref):
    """y = x @ calc_w.T + bias, tiled over (batch, in_features)."""
    k = pl.program_id(1)
    part = jax.lax.dot_general(
        x_ref[...], cw_ref[...].astype(x_ref.dtype),
        dimension_numbers=(((1,), (1,)), ((), ())),
        preferred_element_type=jnp.float32,
    )

    @pl.when(k == 0)
    def _first():
        acc_ref[...] = part

    @pl.when(k > 0)
    def _accum():
        acc_ref[...] += part

    @pl.when(k == pl.num_programs(1) - 1)
    def _finalize():
        out_ref[...] = (acc_ref[...] +
                        bias_ref[...].astype(jnp.float32)).astype(out_ref.dtype)


# ---------------------------------------------------------------------------
# Tiling / VMEM sizing
# ---------------------------------------------------------------------------

def _pick_batch_tile(b_pad, cap=256):
    """Batch tile up to 256 (v6e/v7x MXU width); keep B_pad divisible by TB."""
    if b_pad <= cap:
        return b_pad, b_pad
    for tb in (256, 128):
        if b_pad % tb == 0:
            return tb, b_pad
    return 128, _round_up(b_pad, 128)


def _estimate_vmem(ti, tb, o_pad, r, w_bytes, x_bytes, out_bytes):
    """Pipeline buffers + scratch + in-kernel f32 temporaries for one step."""
    streamed = 2 * (o_pad * ti * w_bytes      # weight slab (double-buffered)
                    + r * ti * w_bytes        # lora_B slab
                    + tb * ti * x_bytes       # x tile
                    + ti * 4)                 # scale slab
    resident = 2 * (o_pad * r * w_bytes       # lora_A (alpha folded)
                    + o_pad * 4               # bias
                    + tb * o_pad * out_bytes)  # output tile
    scratch = tb * o_pad * 4                  # f32 accumulator
    # body temporaries: lora / adapted / calc_w slabs + dot result
    interm = 3 * o_pad * ti * 4 + tb * o_pad * 4
    return streamed + resident + scratch + interm


def _pick_i_tile(i_pad, o_pad, r, tb, w_bytes, x_bytes, out_bytes, budget):
    """Largest multiple-of-128 divisor of i_pad whose working set fits budget."""
    best = 128
    ti = 128
    while ti <= i_pad:
        if i_pad % ti == 0 and _estimate_vmem(
                ti, tb, o_pad, r, w_bytes, x_bytes, out_bytes) <= budget:
            best = ti
        ti += 128
    return best


# ---------------------------------------------------------------------------
# Wrapper
# ---------------------------------------------------------------------------

def dora_forward(x, weight, bias, m, lora_A, lora_B, alpha, *, stream_dtype=None):
    """DoRA forward. `stream_dtype=jnp.bfloat16` halves the weight HBM stream
    (math still accumulates in f32); default keeps the input dtype."""
    x = jnp.asarray(x)
    B, I = x.shape
    O, R = lora_A.shape
    assert weight.shape == (O, I) and lora_B.shape == (R, I)
    bias = jnp.asarray(bias).reshape(-1)
    assert bias.shape == (O,)
    m_vec = jnp.asarray(m).reshape(-1)
    assert m_vec.shape == (I,)

    out_dtype = x.dtype
    sdt = x.dtype if stream_dtype is None else jnp.dtype(stream_dtype)

    # ---- small, parameter-only precompute (cacheable across calls) ----------
    w32 = weight.astype(jnp.float32)
    a_scaled = jnp.float32(alpha) * lora_A.astype(jnp.float32)   # alpha folded
    b32 = lora_B.astype(jnp.float32)
    # ||W + A_s@B||^2 per column, without materializing the (O, I) lora matrix:
    colsum_w2 = jnp.sum(w32 * w32, axis=0)                                 # (I,)
    cross = jnp.einsum("ir,ri->i", w32.T @ a_scaled, b32)                  # (I,)
    quad = jnp.sum(b32 * ((a_scaled.T @ a_scaled) @ b32), axis=0)          # (I,)
    sumsq = colsum_w2 + 2.0 * cross + quad
    safe = jnp.where(sumsq > 0, sumsq, 1.0)
    scale = jnp.where(sumsq > 0,
                      m_vec.astype(jnp.float32) * jax.lax.rsqrt(safe),
                      0.0)                                                 # (I,)

    # ---- layout plumbing + generation-aware tiling --------------------------
    O_pad = max(_round_up(O, 128), 128)
    I_pad = max(_round_up(I, 128), 128)
    B_pad = max(_round_up(B, 8), 8)
    TB, B_pad = _pick_batch_tile(B_pad)

    cap = _vmem_capacity_bytes()
    budget = int(0.75 * cap)           # headroom vs. physical per-core VMEM
    w_bytes = _dtype_bytes(sdt)
    x_bytes = _dtype_bytes(sdt)
    out_bytes = _dtype_bytes(out_dtype)
    TI = _pick_i_tile(I_pad, O_pad, R, TB, w_bytes, x_bytes, out_bytes, budget)
    n_k = I_pad // TI
    n_b = B_pad // TB

    est = _estimate_vmem(TI, TB, O_pad, R, w_bytes, x_bytes, out_bytes)
    vmem_limit = int(min(0.9 * cap, max(1.25 * est, 32 * 2**20)))

    # Zero padding keeps valid outputs unchanged: padded O rows are zero,
    # padded I columns have scale == 0 and x == 0.
    w_p = jnp.zeros((O_pad, I_pad), sdt).at[:O, :I].set(weight.astype(sdt))
    a_p = jnp.zeros((O_pad, R), sdt).at[:O, :].set(a_scaled.astype(sdt))
    b_p = jnp.zeros((R, I_pad), sdt).at[:, :I].set(lora_B.astype(sdt))
    scale_p = jnp.zeros((1, I_pad), jnp.float32).at[0, :I].set(scale)
    bias_p = jnp.zeros((1, O_pad), jnp.float32).at[0, :O].set(bias.astype(jnp.float32))
    x_p = jnp.zeros((B_pad, I_pad), sdt).at[:B, :I].set(x.astype(sdt))

    dims2 = ("parallel", "arbitrary")

    if n_b == 1:
        # ---- fused single-pass kernel ---------------------------------------
        cost = pl.CostEstimate(
            flops=int(2 * B_pad * O_pad * I_pad
                      + 2 * O_pad * R * I_pad
                      + 2 * O_pad * I_pad),
            transcendentals=0,
            bytes_accessed=int(w_bytes * (O_pad * I_pad + O_pad * R + R * I_pad)
                               + x_bytes * B_pad * I_pad
                               + 4 * (I_pad + O_pad)
                               + out_bytes * B_pad * O_pad),
        )
        out_padded = pl.pallas_call(
            dora_fused_kernel,
            out_shape=jax.ShapeDtypeStruct((B_pad, O_pad), out_dtype),
            grid_spec=pltpu.PrefetchScalarGridSpec(
                num_scalar_prefetch=0,
                grid=(n_b, n_k),
                in_specs=[
                    pl.BlockSpec((O_pad, TI), lambda bi, k: (0, k)),   # weight slab
                    pl.BlockSpec((O_pad, R), lambda bi, k: (0, 0)),    # alpha*lora_A
                    pl.BlockSpec((R, TI), lambda bi, k: (0, k)),       # lora_B slab
                    pl.BlockSpec((1, TI), lambda bi, k: (0, k)),       # scale slab
                    pl.BlockSpec((1, O_pad), lambda bi, k: (0, 0)),    # bias
                    pl.BlockSpec((TB, TI), lambda bi, k: (bi, k)),     # x tile
                ],
                out_specs=pl.BlockSpec((TB, O_pad), lambda bi, k: (bi, 0)),
                scratch_shapes=[pltpu.VMEM((TB, O_pad), jnp.float32)],
            ),
            compiler_params=pltpu.CompilerParams(
                dimension_semantics=dims2,
                vmem_limit_bytes=vmem_limit,
            ),
            cost_estimate=cost,
        )(w_p, a_p, b_p, scale_p, bias_p, x_p)
        return out_padded[:B, :O]

    # ---- n_b > 1: derive calc_w once, then a plain pipelined GEMM -----------
    calc_w = pl.pallas_call(
        dora_calc_w_kernel,
        out_shape=jax.ShapeDtypeStruct((O_pad, I_pad), sdt),
        grid_spec=pltpu.PrefetchScalarGridSpec(
            num_scalar_prefetch=0,
            grid=(n_k,),
            in_specs=[
                pl.BlockSpec((O_pad, TI), lambda k: (0, k)),
                pl.BlockSpec((O_pad, R), lambda k: (0, 0)),
                pl.BlockSpec((R, TI), lambda k: (0, k)),
                pl.BlockSpec((1, TI), lambda k: (0, k)),
            ],
            out_specs=pl.BlockSpec((O_pad, TI), lambda k: (0, k)),
        ),
        compiler_params=pltpu.CompilerParams(
            dimension_semantics=("parallel",),
            vmem_limit_bytes=vmem_limit,
        ),
    )(w_p, a_p, b_p, scale_p)

    out_padded = pl.pallas_call(
        linear_kernel,
        out_shape=jax.ShapeDtypeStruct((B_pad, O_pad), out_dtype),
        grid_spec=pltpu.PrefetchScalarGridSpec(
            num_scalar_prefetch=0,
            grid=(n_b, n_k),
            in_specs=[
                pl.BlockSpec((O_pad, TI), lambda bi, k: (0, k)),   # calc_w slab
                pl.BlockSpec((1, O_pad), lambda bi, k: (0, 0)),    # bias
                pl.BlockSpec((TB, TI), lambda bi, k: (bi, k)),     # x tile
            ],
            out_specs=pl.BlockSpec((TB, O_pad), lambda bi, k: (bi, 0)),
            scratch_shapes=[pltpu.VMEM((TB, O_pad), jnp.float32)],
        ),
        compiler_params=pltpu.CompilerParams(
            dimension_semantics=dims2,
            vmem_limit_bytes=vmem_limit,
        ),
    )(calc_w, bias_p, x_p)
    return out_padded[:B, :O]


def dora_reference(x, weight, bias, m, lora_A, lora_B, alpha):
    lora = alpha * (lora_A @ lora_B)
    adapted = weight + lora
    col_norm = jnp.linalg.norm(adapted, axis=0, keepdims=True)
    calc_w = m * (adapted / col_norm)
    return x @ calc_w.T + bias[None, :]


if __name__ == "__main__":
    # Small shapes consistent with nn.Linear(in_features=32, out_features=32).
    batch, in_features, out_features, rank, alpha = 8, 32, 32, 4, 8

    key = jax.random.PRNGKey(0)
    k_w, k_b, k_a, k_x, k_b2 = jax.random.split(key, 5)

    # Deterministic parameter init mirroring DoRALayer.__init__
    weight = jax.random.normal(k_w, (out_features, in_features), jnp.float32) * 0.1
    bias = jax.random.normal(k_b, (out_features,), jnp.float32) * 0.1
    m = jnp.linalg.norm(weight, axis=0, keepdims=True)               # (1, in)
    std_dev = 1.0 / jnp.sqrt(jnp.float32(rank))
    lora_A = jax.random.normal(k_a, (out_features, rank), jnp.float32) * std_dev
    lora_B = jnp.zeros((rank, in_features), jnp.float32)             # zeros per module init

    x = jax.random.normal(k_x, (batch, in_features), jnp.float32)

    # (1) f32 streaming, fused single-pass path — strict check vs reference.
    ref = dora_reference(x, weight, bias, m, lora_A, lora_B, alpha)
    out = jax.block_until_ready(dora_forward(x, weight, bias, m, lora_A, lora_B, alpha))
    assert out.shape == (batch, out_features)
    assert jnp.allclose(out, ref, atol=1e-4, rtol=1e-4), "f32 fused path mismatch"

    # (2) Non-zero lora_B exercises the lora + analytic-column-norm path.
    lora_B2 = jax.random.normal(k_b2, (rank, in_features), jnp.float32) * 0.05
    ref2 = dora_reference(x, weight, bias, m, lora_A, lora_B2, alpha)
    out2 = jax.block_until_ready(dora_forward(x, weight, bias, m, lora_A, lora_B2, alpha))
    assert jnp.allclose(out2, ref2, atol=1e-4, rtol=1e-4), "analytic-norm path mismatch"

    # (3) bf16 weight/activation streaming (f32 accumulation) — looser tolerance.
    out3 = jax.block_until_ready(
        dora_forward(x, weight, bias, m, lora_A, lora_B2, alpha,
                     stream_dtype=jnp.bfloat16))
    assert jnp.allclose(out3, ref2, atol=5e-2, rtol=5e-2), "bf16 streaming path mismatch"

    # (4) Multi batch-tile path (calc_w precompute + plain GEMM).
    x_big = jax.random.normal(k_x, (384, in_features), jnp.float32)
    ref_big = dora_reference(x_big, weight, bias, m, lora_A, lora_B2, alpha)
    out_big = jax.block_until_ready(
        dora_forward(x_big, weight, bias, m, lora_A, lora_B2, alpha))
    assert out_big.shape == (384, out_features)
    assert jnp.allclose(out_big, ref_big, atol=1e-4, rtol=1e-4), "two-pass path mismatch"

    print("KERNEL_OK")
</pallas_src>

<mosaic_0001>
module attributes {stable_mosaic.version = 11 : i64} {
  func.func @dora_fused_kernel(%arg0: i32, %arg1: i32, %arg2: memref<128x128xf32, #tpu.memory_space<vmem>>, %arg3: memref<128x4xf32, #tpu.memory_space<vmem>>, %arg4: memref<4x128xf32, #tpu.memory_space<vmem>>, %arg5: memref<1x128xf32, #tpu.memory_space<vmem>>, %arg6: memref<1x128xf32, #tpu.memory_space<vmem>>, %arg7: memref<8x128xf32, #tpu.memory_space<vmem>>, %arg8: memref<8x128xf32, #tpu.memory_space<vmem>>, %arg9: memref<8x128xf32, #tpu.memory_space<vmem>>) attributes {dimension_semantics = [#tpu.dimension_semantics<parallel>, #tpu.dimension_semantics<arbitrary>], iteration_bounds = array<i64: 1, 1>, scalar_prefetch = 0 : i64, scratch_operands = 1 : i64, tpu.core_type = #tpu.core_type<tc>, window_params = [{transform_indices = @transform_0, window_bounds = array<i64: 128, 128>}, {pipeline_mode = #tpu.pipeline_mode<synchronous>, transform_indices = @transform_1, window_bounds = array<i64: 128, 4>}, {transform_indices = @transform_2, window_bounds = array<i64: 4, 128>}, {transform_indices = @transform_3, window_bounds = array<i64: 1, 128>}, {pipeline_mode = #tpu.pipeline_mode<synchronous>, transform_indices = @transform_4, window_bounds = array<i64: 1, 128>}, {transform_indices = @transform_5, window_bounds = array<i64: 8, 128>}, {transform_indices = @transform_6, window_bounds = array<i64: 8, 128>}]} {
    %c0 = arith.constant 0 : index
    %c0_0 = arith.constant 0 : index
    %0 = vector.load %arg3[%c0, %c0_0] : memref<128x4xf32, #tpu.memory_space<vmem>>, vector<128x4xf32>
    %c0_1 = arith.constant 0 : index
    %c0_2 = arith.constant 0 : index
    %1 = vector.load %arg4[%c0_1, %c0_2] : memref<4x128xf32, #tpu.memory_space<vmem>>, vector<4x128xf32>
    %cst = arith.constant dense<0.000000e+00> : vector<128x128xf32>
    %2 = tpu.matmul %0, %1, %cst {dimension_numbers = #tpu.dot_dimension_numbers<[1], [0], [0], [1], [0, 0, 1, 1], [], []>} : vector<128x4xf32>, vector<4x128xf32>, vector<128x128xf32> -> vector<128x128xf32>
    %c0_3 = arith.constant 0 : index
    %c0_4 = arith.constant 0 : index
    %3 = vector.load %arg2[%c0_3, %c0_4] : memref<128x128xf32, #tpu.memory_space<vmem>>, vector<128x128xf32>
    %4 = arith.addf %3, %2 : vector<128x128xf32>
    %c0_5 = arith.constant 0 : index
    %c0_6 = arith.constant 0 : index
    %5 = vector.load %arg5[%c0_5, %c0_6] : memref<1x128xf32, #tpu.memory_space<vmem>>, vector<1x128xf32>
    %6 = vector.broadcast %5 : vector<1x128xf32> to vector<128x128xf32>
    %7 = arith.mulf %4, %6 : vector<128x128xf32>
    %c0_7 = arith.constant 0 : index
    %c0_8 = arith.constant 0 : index
    %8 = vector.load %arg7[%c0_7, %c0_8] : memref<8x128xf32, #tpu.memory_space<vmem>>, vector<8x128xf32>
    %cst_9 = arith.constant dense<0.000000e+00> : vector<8x128xf32>
    %9 = tpu.matmul %8, %7, %cst_9 {dimension_numbers = #tpu.dot_dimension_numbers<[1], [1], [0], [0], [0, 0, 1, 0], [], []>} : vector<8x128xf32>, vector<128x128xf32>, vector<8x128xf32> -> vector<8x128xf32>
    %c0_i32 = arith.constant 0 : i32
    %10 = arith.cmpi eq, %arg1, %c0_i32 : i32
    %11 = arith.extui %10 : i1 to i32
    %c0_i32_10 = arith.constant 0 : i32
    %12 = arith.cmpi ne, %11, %c0_i32_10 : i32
    scf.if %12 {
      %c0_15 = arith.constant 0 : index
      %c0_16 = arith.constant 0 : index
      %19 = vector.load %arg9[%c0_15, %c0_16] : memref<8x128xf32, #tpu.memory_space<vmem>>, vector<8x128xf32>
      tpu.vector_store %arg9[%c0_15, %c0_16], %9 {strides = array<i32>} : memref<8x128xf32, #tpu.memory_space<vmem>>, vector<8x128xf32>,
    } else {
    }
    %c0_i32_11 = arith.constant 0 : i32
    %13 = arith.cmpi sgt, %arg1, %c0_i32_11 : i32
    %14 = arith.extui %13 : i1 to i32
    %c0_i32_12 = arith.constant 0 : i32
    %15 = arith.cmpi ne, %14, %c0_i32_12 : i32
    scf.if %15 {
      %c0_15 = arith.constant 0 : index
      %c0_16 = arith.constant 0 : index
      %19 = vector.load %arg9[%c0_15, %c0_16] : memref<8x128xf32, #tpu.memory_space<vmem>>, vector<8x128xf32>
      %20 = arith.addf %19, %9 : vector<8x128xf32>
      %c0_17 = arith.constant 0 : index
      %c0_18 = arith.constant 0 : index
      %21 = vector.load %arg9[%c0_17, %c0_18] : memref<8x128xf32, #tpu.memory_space<vmem>>, vector<8x128xf32>
      tpu.vector_store %arg9[%c0_17, %c0_18], %20 {strides = array<i32>} : memref<8x128xf32, #tpu.memory_space<vmem>>, vector<8x128xf32>,
    } else {
    }
    %c0_i32_13 = arith.constant 0 : i32
    %16 = arith.cmpi eq, %arg1, %c0_i32_13 : i32
    %17 = arith.extui %16 : i1 to i32
    %c0_i32_14 = arith.constant 0 : i32
    %18 = arith.cmpi ne, %17, %c0_i32_14 : i32
    scf.if %18 {
      %c0_15 = arith.constant 0 : index
      %c0_16 = arith.constant 0 : index
      %19 = vector.load %arg9[%c0_15, %c0_16] : memref<8x128xf32, #tpu.memory_space<vmem>>, vector<8x128xf32>
      %c0_17 = arith.constant 0 : index
      %c0_18 = arith.constant 0 : index
      %20 = vector.load %arg6[%c0_17, %c0_18] : memref<1x128xf32, #tpu.memory_space<vmem>>, vector<1x128xf32>
      %21 = vector.broadcast %20 : vector<1x128xf32> to vector<8x128xf32>
      %22 = arith.addf %19, %21 : vector<8x128xf32>
      %c0_19 = arith.constant 0 : index
      %c0_20 = arith.constant 0 : index
      %23 = vector.load %arg8[%c0_19, %c0_20] : memref<8x128xf32, #tpu.memory_space<vmem>>, vector<8x128xf32>
      tpu.vector_store %arg8[%c0_19, %c0_20], %22 {strides = array<i32>} : memref<8x128xf32, #tpu.memory_space<vmem>>, vector<8x128xf32>,
    } else {
    }
    return
  }
  func.func @transform_0(%arg0: i32, %arg1: i32) -> (i32, i32) {
    %c0_i32 = arith.constant 0 : i32
    %c0_i32_0 = arith.constant 0 : i32
    return %c0_i32, %arg1 : i32, i32
  }
  func.func @transform_1(%arg0: i32, %arg1: i32) -> (i32, i32) {
    %c0_i32 = arith.constant 0 : i32
    %c0_i32_0 = arith.constant 0 : i32
    %c0_i32_1 = arith.constant 0 : i32
    return %c0_i32, %c0_i32_0 : i32, i32
  }
  func.func @transform_2(%arg0: i32, %arg1: i32) -> (i32, i32) {
    %c0_i32 = arith.constant 0 : i32
    %c0_i32_0 = arith.constant 0 : i32
    return %c0_i32, %arg1 : i32, i32
  }
  func.func @transform_3(%arg0: i32, %arg1: i32) -> (i32, i32) {
    %c0_i32 = arith.constant 0 : i32
    %c0_i32_0 = arith.constant 0 : i32
    return %c0_i32, %arg1 : i32, i32
  }
  func.func @transform_4(%arg0: i32, %arg1: i32) -> (i32, i32) {
    %c0_i32 = arith.constant 0 : i32
    %c0_i32_0 = arith.constant 0 : i32
    %c0_i32_1 = arith.constant 0 : i32
    return %c0_i32, %c0_i32_0 : i32, i32
  }
  func.func @transform_5(%arg0: i32, %arg1: i32) -> (i32, i32) {
    %c0_i32 = arith.constant 0 : i32
    return %arg0, %arg1 : i32, i32
  }
  func.func @transform_6(%arg0: i32, %arg1: i32) -> (i32, i32) {
    %c0_i32 = arith.constant 0 : i32
    %c0_i32_0 = arith.constant 0 : i32
    return %arg0, %c0_i32 : i32, i32
  }
}

</mosaic_0001>

<llo_original>
// kernel: tpu_custom_call.1
$region0: #{tpu_custom_call.1}
  #allocation0 [shape = 'u32[]', space=smem, size = 0x4, offset = 0x4, fixed_abs, tag = 'smem constant byte address 0x4 - core index']
  #allocation1 [shape = 'u32[144,128]{1,0:T(1,128)}', space=vmem, size = 0x12000, scoped, tag = 'internal scratch']
  #allocation2 [shape = 'f32[8,128]{1,0:T(8,128)}', space=vmem, size = 0x1000, scoped, tag = 'scratch operand']
  %s0 = inlined_call_operand.vmem [shape: f32[128,128], index: 0, kind: input, shape index: {}]
  %s1 = inlined_call_operand.vmem [shape: f32[128,4], index: 1, kind: input, shape index: {}]
  %s2 = inlined_call_operand.hbm [shape: f32[4,128], index: 2, kind: input, shape index: {}]
  %s3 = inlined_call_operand.vmem [shape: f32[1,128], index: 3, kind: input, shape index: {}]
  %s4 = inlined_call_operand.vmem [shape: f32[1,128], index: 4, kind: input, shape index: {}]
  %s5 = inlined_call_operand.vmem [shape: f32[8,128], index: 5, kind: input, shape index: {}]
  %s6 = inlined_call_operand.hbm [shape: f32[8,128], index: 6, kind: output, shape index: {}]
  %s7 = sld [smem:[#allocation0]]
  $region50: #{tpu_custom_call.1} parent=0
    _
  %s9 = ssub.s32 1, %s7
  %s10 = scalar_select 0, %s9, %s7
  $region1: #{tpu_custom_call.1} parent=0
    #allocation3 [shape = 'u8[2048]{0}', space=vmem, size = 0x800, scoped, tag = 'input window, operand 2, single buffered']
    #allocation4 [shape = 's32[1]{0}', space=sflag, size = 0x4, scoped, tag = 'scoped memory for tpu_custom_call.1']
    #allocation5 [shape = 's32[1]{0}', space=sflag, size = 0x4, scoped, tag = 'scoped memory for tpu_custom_call.1']
    #allocation6 [shape = 'u8[4096]{0}', space=vmem, size = 0x1000, scoped, tag = 'output window, operand 0, single buffered']
    %11 = vsyncpa [#allocation4], 0
    %12 = vsyncpa [#allocation5], 0
    // Predicated region
    $region2: #{tpu_custom_call.1} parent=1 // pred_check
      _
    $region3: #{tpu_custom_call.1} parent=1 // pred_check_branch
      %14 = sbr.rel (0) target = $region5
    $region4: #{tpu_custom_call.1} parent=1 // pred_region
      _
    $region5: #{tpu_custom_call.1} parent=1 // pred_fallthru
      _
    // Predicated region
    $region6: #{tpu_custom_call.1} parent=1 // pred_check
      _
    $region7: #{tpu_custom_call.1} parent=1 // pred_check_branch
      %16 = sbr.rel (0) target = $region9
    $region8: #{tpu_custom_call.1} parent=1 // pred_region
      _
    $region9: #{tpu_custom_call.1} parent=1 // pred_fallthru
      _
    // Predicated region
    $region10: #{tpu_custom_call.1} parent=1 // pred_check
      _
    $region11: #{tpu_custom_call.1} parent=1 // pred_check_branch
      %18 = sbr.rel (0) target = $region13
    $region12: #{tpu_custom_call.1} parent=1 // pred_region
      %s20 = ssub.s32 64, 64
      %21 = vsyncadd [#allocation4], %s20
      %s23 = sshll.u32 [#allocation3], 4
      %s24 = int_to_ptr.vmem [resolvable:$true] %s23
      %26 = dma.hbm_to_vmem [thread:$0]  %s2, 64, %s24, [#allocation4]
    $region13: #{tpu_custom_call.1} parent=1 // pred_fallthru
      _
    // Predicated region
    $region14: #{tpu_custom_call.1} parent=1 // pred_check
      _
    $region15: #{tpu_custom_call.1} parent=1 // pred_check_branch
      %28 = sbr.rel (0) target = $region17
    $region16: #{tpu_custom_call.1} parent=1 // pred_region
      _
    $region17: #{tpu_custom_call.1} parent=1 // pred_fallthru
      _
    // Predicated region
    $region18: #{tpu_custom_call.1} parent=1 // pred_check
      _
    $region19: #{tpu_custom_call.1} parent=1 // pred_check_branch
      %30 = sbr.rel (0) target = $region21
    $region20: #{tpu_custom_call.1} parent=1 // pred_region
      _
    $region21: #{tpu_custom_call.1} parent=1 // pred_fallthru
      _
    // Predicated region
    $region22: #{tpu_custom_call.1} parent=1 // pred_check
      _
    $region23: #{tpu_custom_call.1} parent=1 // pred_check_branch
      %32 = sbr.rel (0) target = $region25
    $region24: #{tpu_custom_call.1} parent=1 // pred_region
      _
    $region25: #{tpu_custom_call.1} parent=1 // pred_fallthru
      _
    // Predicated region
    $region26: #{tpu_custom_call.1} parent=1 // pred_check
      _
    $region27: #{tpu_custom_call.1} parent=1 // pred_check_branch
      %34 = sbr.rel (0) target = $region29
    $region28: #{tpu_custom_call.1} parent=1 // pred_region
      %35 = dma.done [#allocation4], 64
    $region29: #{tpu_custom_call.1} parent=1 // pred_fallthru
      _
    %v36 = vld [vmem:[%s1] sm:$0xff]
    %v37 = vld [vmem:[%s1 + $0x8] sm:$0xff]
    %v38 = vld [vmem:[%s1 + $0x10] sm:$0xff]
    %v39 = vld [vmem:[%s1 + $0x18] sm:$0xff]
    %v40 = vld [vmem:[%s1 + $0x20] sm:$0xff]
    %v41 = vld [vmem:[%s1 + $0x28] sm:$0xff]
    %v42 = vld [vmem:[%s1 + $0x30] sm:$0xff]
    %v43 = vld [vmem:[%s1 + $0x38] sm:$0xff]
    %v44 = vld [vmem:[%s1 + $0x40] sm:$0xff]
    %v45 = vld [vmem:[%s1 + $0x48] sm:$0xff]
    %v46 = vld [vmem:[%s1 + $0x50] sm:$0xff]
    %v47 = vld [vmem:[%s1 + $0x58] sm:$0xff]
    %v48 = vld [vmem:[%s1 + $0x60] sm:$0xff]
    %v49 = vld [vmem:[%s1 + $0x68] sm:$0xff]
    %v50 = vld [vmem:[%s1 + $0x70] sm:$0xff]
    %v51 = vld [vmem:[%s1 + $0x78] sm:$0xff]
    %v52 = vld [vmem:[#allocation3] sm:$0xf]
    %vm53 = vcmask 31744
    %v55 = vsel %vm53, %v36, 0
    %v58 = vsel %vm53, %v37, 0
    %v61 = vsel %vm53, %v38, 0
    %v64 = vsel %vm53, %v39, 0
    %v67 = vsel %vm53, %v40, 0
    %v70 = vsel %vm53, %v41, 0
    %v73 = vsel %vm53, %v42, 0
    %v76 = vsel %vm53, %v43, 0
    %v79 = vsel %vm53, %v44, 0
    %v82 = vsel %vm53, %v45, 0
    %v85 = vsel %vm53, %v46, 0
    %v88 = vsel %vm53, %v47, 0
    %v91 = vsel %vm53, %v48, 0
    %v94 = vsel %vm53, %v49, 0
    %v97 = vsel %vm53, %v50, 0
    %v100 = vsel %vm53, %v51, 0
    %vm102 = vcmask 1043456
    %v104 = vsel %vm102, %v52, 0
    %106 = vmatprep.subr.mxu0 0.0
    %107 = vmatpush1.msra.mxu0 0.0
    %108 = vmatprep.subr.mxu0 0.0
    %109 = vmatpush1.msra.mxu0 0.0
    %110 = vmatprep.subr.mxu0 0.0
    %111 = vmatpush1.msra.mxu0 0.0
    %112 = vmatprep.subr.mxu0 0.0
    %113 = vmatpush1.msra.mxu0 0.0
    %114 = vmatprep.subr.mxu0 0.0
    %115 = vmatpush1.msra.mxu0 0.0
    %116 = vmatprep.subr.mxu0 0.0
    %117 = vmatpush1.msra.mxu0 0.0
    %118 = vmatprep.subr.mxu0 0.0
    %119 = vmatpush1.msra.mxu0 0.0
    %120 = vmatprep.subr.mxu0 0.0
    %121 = vmatpush1.msra.mxu0 0.0
    %122 = vmatprep.subr.mxu0 0.0
    %123 = vmatpush1.msra.mxu0 0.0
    %124 = vmatprep.subr.mxu0 0.0
    %125 = vmatpush1.msra.mxu0 0.0
    %126 = vmatprep.subr.mxu0 0.0
    %127 = vmatpush1.msra.mxu0 0.0
    %128 = vmatprep.subr.mxu0 0.0
    %129 = vmatpush1.msra.mxu0 0.0
    %130 = vmatprep.subr.mxu0 0.0
    %131 = vmatpush1.msra.mxu0 0.0
    %132 = vmatprep.subr.mxu0 0.0
    %133 = vmatpush1.msra.mxu0 0.0
    %134 = vmatprep.subr.mxu0 0.0
    %135 = vmatpush1.msra.mxu0 0.0
    %136 = vmatprep.subr.mxu0 0.0
    %137 = vmatpush1.msra.mxu0 %v104
    %138 = vmatprep.subr.mxu0 0.0
    %139 = vmatpush2.msra.mxu0 0.0
    %140 = vmatprep.subr.mxu0 0.0
    %141 = vmatpush2.msra.mxu0 0.0
    %142 = vmatprep.subr.mxu0 0.0
    %143 = vmatpush2.msra.mxu0 0.0
    %144 = vmatprep.subr.mxu0 0.0
    %145 = vmatpush2.msra.mxu0 0.0
    %146 = vmatprep.subr.mxu0 0.0
    %147 = vmatpush2.msra.mxu0 0.0
    %148 = vmatprep.subr.mxu0 0.0
    %149 = vmatpush2.msra.mxu0 0.0
    %150 = vmatprep.subr.mxu0 0.0
    %151 = vmatpush2.msra.mxu0 0.0
    %152 = vmatprep.subr.mxu0 0.0
    %153 = vmatpush2.msra.mxu0 0.0
    %154 = vmatprep.subr.mxu0 0.0
    %155 = vmatpush2.msra.mxu0 0.0
    %156 = vmatprep.subr.mxu0 0.0
    %157 = vmatpush2.msra.mxu0 0.0
    %158 = vmatprep.subr.mxu0 0.0
    %159 = vmatpush2.msra.mxu0 0.0
    %160 = vmatprep.subr.mxu0 0.0
    %161 = vmatpush2.msra.mxu0 0.0
    %162 = vmatprep.subr.mxu0 0.0
    %163 = vmatpush2.msra.mxu0 0.0
    %164 = vmatprep.subr.mxu0 0.0
    %165 = vmatpush2.msra.mxu0 0.0
    %166 = vmatprep.subr.mxu0 0.0
    %167 = vmatpush2.msra.mxu0 0.0
    %168 = vmatprep.subr.mxu0 0.0
    %169 = vmatpush2.msra.mxu0 0.0
    %170 = vmatprep.mubr.f32.mxu0 0.0
    %171 = vmatmul.mubr.f32.gmra.mxu0 %v55
    %v172 = vpop.f32.mrf.mxu0
    %v173 = vadd.f32 0.0, %v172
    %v174 = vpop.f32.mrf.mxu0
    %175 = vmatprep.mubr.f32.mxu0 0.0
    %176 = vmatmul.mubr.f32.gmra.mxu0 %v58
    %v177 = vpop.f32.mrf.mxu0
    %v178 = vadd.f32 0.0, %v177
    %v179 = vpop.f32.mrf.mxu0
    %180 = vmatprep.mubr.f32.mxu0 0.0
    %181 = vmatmul.mubr.f32.gmra.mxu0 %v61
    %v182 = vpop.f32.mrf.mxu0
    %v183 = vadd.f32 0.0, %v182
    %v184 = vpop.f32.mrf.mxu0
    %185 = vmatprep.mubr.f32.mxu0 0.0
    %186 = vmatmul.mubr.f32.gmra.mxu0 %v64
    %v187 = vpop.f32.mrf.mxu0
    %v188 = vadd.f32 0.0, %v187
    %v189 = vpop.f32.mrf.mxu0
    %190 = vmatprep.mubr.f32.mxu0 0.0
    %191 = vmatmul.mubr.f32.gmra.mxu0 %v67
    %v192 = vpop.f32.mrf.mxu0
    %v193 = vadd.f32 0.0, %v192
    %v194 = vpop.f32.mrf.mxu0
    %195 = vmatprep.mubr.f32.mxu0 0.0
    %196 = vmatmul.mubr.f32.gmra.mxu0 %v70
    %v197 = vpop.f32.mrf.mxu0
    %v198 = vadd.f32 0.0, %v197
    %v199 = vpop.f32.mrf.mxu0
    %200 = vmatprep.mubr.f32.mxu0 0.0
    %201 = vmatmul.mubr.f32.gmra.mxu0 %v73
    %v202 = vpop.f32.mrf.mxu0
    %v203 = vadd.f32 0.0, %v202
    %v204 = vpop.f32.mrf.mxu0
    %205 = vmatprep.mubr.f32.mxu0 0.0
    %206 = vmatmul.mubr.f32.gmra.mxu0 %v76
    %v207 = vpop.f32.mrf.mxu0
    %v208 = vadd.f32 0.0, %v207
    %v209 = vpop.f32.mrf.mxu0
    %210 = vmatprep.mubr.f32.mxu0 0.0
    %211 = vmatmul.mubr.f32.gmra.mxu0 %v79
    %v212 = vpop.f32.mrf.mxu0
    %v213 = vadd.f32 0.0, %v212
    %v214 = vpop.f32.mrf.mxu0
    %215 = vmatprep.mubr.f32.mxu0 0.0
    %216 = vmatmul.mubr.f32.gmra.mxu0 %v82
    %v217 = vpop.f32.mrf.mxu0
    %v218 = vadd.f32 0.0, %v217
    %v219 = vpop.f32.mrf.mxu0
    %220 = vmatprep.mubr.f32.mxu0 0.0
    %221 = vmatmul.mubr.f32.gmra.mxu0 %v85
    %v222 = vpop.f32.mrf.mxu0
    %v223 = vadd.f32 0.0, %v222
    %v224 = vpop.f32.mrf.mxu0
    %225 = vmatprep.mubr.f32.mxu0 0.0
    %226 = vmatmul.mubr.f32.gmra.mxu0 %v88
    %v227 = vpop.f32.mrf.mxu0
    %v228 = vadd.f32 0.0, %v227
    %v229 = vpop.f32.mrf.mxu0
    %230 = vmatprep.mubr.f32.mxu0 0.0
    %231 = vmatmul.mubr.f32.gmra.mxu0 %v91
    %v232 = vpop.f32.mrf.mxu0
    %v233 = vadd.f32 0.0, %v232
    %v234 = vpop.f32.mrf.mxu0
    %235 = vmatprep.mubr.f32.mxu0 0.0
    %236 = vmatmul.mubr.f32.gmra.mxu0 %v94
    %v237 = vpop.f32.mrf.mxu0
    %v238 = vadd.f32 0.0, %v237
    %v239 = vpop.f32.mrf.mxu0
    %240 = vmatprep.mubr.f32.mxu0 0.0
    %241 = vmatmul.mubr.f32.gmra.mxu0 %v97
    %v242 = vpop.f32.mrf.mxu0
    %v243 = vadd.f32 0.0, %v242
    %v244 = vpop.f32.mrf.mxu0
    %245 = vmatprep.mubr.f32.mxu0 0.0
    %246 = vmatmul.mubr.f32.gmra.mxu0 %v100
    %v247 = vpop.f32.mrf.mxu0
    %v248 = vadd.f32 0.0, %v247
    %v249 = vpop.f32.mrf.mxu0
    %250 = vdwg.mxu0
    %v251 = vld [vmem:[%s0] sm:$0xff]
    %v252 = vld [vmem:[%s0 + $0x8] sm:$0xff]
    %v253 = vld [vmem:[%s0 + $0x10] sm:$0xff]
    %v254 = vld [vmem:[%s0 + $0x18] sm:$0xff]
    %v255 = vld [vmem:[%s0 + $0x20] sm:$0xff]
    %v256 = vld [vmem:[%s0 + $0x28] sm:$0xff]
    %v257 = vld [vmem:[%s0 + $0x30] sm:$0xff]
    %v258 = vld [vmem:[%s0 + $0x38] sm:$0xff]
    %v259 = vld [vmem:[%s0 + $0x40] sm:$0xff]
    %v260 = vld [vmem:[%s0 + $0x48] sm:$0xff]
    %v261 = vld [vmem:[%s0 + $0x50] sm:$0xff]
    %v262 = vld [vmem:[%s0 + $0x58] sm:$0xff]
    %v263 = vld [vmem:[%s0 + $0x60] sm:$0xff]
    %v264 = vld [vmem:[%s0 + $0x68] sm:$0xff]
    %v265 = vld [vmem:[%s0 + $0x70] sm:$0xff]
    %v266 = vld [vmem:[%s0 + $0x78] sm:$0xff]
    %v267 = vadd.f32 %v251, %v173
    %v268 = vadd.f32 %v252, %v178
    %v269 = vadd.f32 %v253, %v183
    %v270 = vadd.f32 %v254, %v188
    %v271 = vadd.f32 %v255, %v193
    %v272 = vadd.f32 %v256, %v198
    %v273 = vadd.f32 %v257, %v203
    %v274 = vadd.f32 %v258, %v208
    %v275 = vadd.f32 %v259, %v213
    %v276 = vadd.f32 %v260, %v218
    %v277 = vadd.f32 %v261, %v223
    %v278 = vadd.f32 %v262, %v228
    %v279 = vadd.f32 %v263, %v233
    %v280 = vadd.f32 %v264, %v238
    %v281 = vadd.f32 %v265, %v243
    %v282 = vadd.f32 %v266, %v248
    %v283 = vld [vmem:[%s3] sm:$0x1]
    %v285 = vlaneseq
    %v286 = vshrl.u32 %v285, 7
    %v287 = vsub.s32 0, %v286
    %v288 = vrot.slane %v283, %v287
    %v290 = vmul.f32 %v267, %v288
    %v291 = vmul.f32 %v268, %v288
    %v292 = vmul.f32 %v269, %v288
    %v293 = vmul.f32 %v270, %v288
    %v294 = vmul.f32 %v271, %v288
    %v295 = vmul.f32 %v272, %v288
    %v296 = vmul.f32 %v273, %v288
    %v297 = vmul.f32 %v274, %v288
    %v298 = vmul.f32 %v275, %v288
    %v299 = vmul.f32 %v276, %v288
    %v300 = vmul.f32 %v277, %v288
    %v301 = vmul.f32 %v278, %v288
    %v302 = vmul.f32 %v279, %v288
    %v303 = vmul.f32 %v280, %v288
    %v304 = vmul.f32 %v281, %v288
    %v305 = vmul.f32 %v282, %v288
    %v306 = vld [vmem:[%s5] sm:$0xff]
    %307 = vmatprep.subr.mxu0 0.0
    %308 = vmatpush1.xpose.msra.mxu0 %v305
    %309 = vmatprep.subr.mxu0 0.0
    %310 = vmatpush1.xpose.msra.mxu0 %v304
    %311 = vmatprep.subr.mxu0 0.0
    %312 = vmatpush1.xpose.msra.mxu0 %v303
    %313 = vmatprep.subr.mxu0 0.0
    %314 = vmatpush1.xpose.msra.mxu0 %v302
    %315 = vmatprep.subr.mxu0 0.0
    %316 = vmatpush1.xpose.msra.mxu0 %v301
    %317 = vmatprep.subr.mxu0 0.0
    %318 = vmatpush1.xpose.msra.mxu0 %v300
    %319 = vmatprep.subr.mxu0 0.0
    %320 = vmatpush1.xpose.msra.mxu0 %v299
    %321 = vmatprep.subr.mxu0 0.0
    %322 = vmatpush1.xpose.msra.mxu0 %v298
    %323 = vmatprep.subr.mxu0 0.0
    %324 = vmatpush1.xpose.msra.mxu0 %v297
    %325 = vmatprep.subr.mxu0 0.0
    %326 = vmatpush1.xpose.msra.mxu0 %v296
    %327 = vmatprep.subr.mxu0 0.0
    %328 = vmatpush1.xpose.msra.mxu0 %v295
    %329 = vmatprep.subr.mxu0 0.0
    %330 = vmatpush1.xpose.msra.mxu0 %v294
    %331 = vmatprep.subr.mxu0 0.0
    %332 = vmatpush1.xpose.msra.mxu0 %v293
    %333 = vmatprep.subr.mxu0 0.0
    %334 = vmatpush1.xpose.msra.mxu0 %v292
    %335 = vmatprep.subr.mxu0 0.0
    %336 = vmatpush1.xpose.msra.mxu0 %v291
    %337 = vmatprep.subr.mxu0 0.0
    %338 = vmatpush1.xpose.msra.mxu0 %v290
    %339 = vmatprep.subr.mxu0 0.0
    %340 = vmatpush2.xpose.msra.mxu0 0.0
    %341 = vmatprep.subr.mxu0 0.0
    %342 = vmatpush2.xpose.msra.mxu0 0.0
    %343 = vmatprep.subr.mxu0 0.0
    %344 = vmatpush2.xpose.msra.mxu0 0.0
    %345 = vmatprep.subr.mxu0 0.0
    %346 = vmatpush2.xpose.msra.mxu0 0.0
    %347 = vmatprep.subr.mxu0 0.0
    %348 = vmatpush2.xpose.msra.mxu0 0.0
    %349 = vmatprep.subr.mxu0 0.0
    %350 = vmatpush2.xpose.msra.mxu0 0.0
    %351 = vmatprep.subr.mxu0 0.0
    %352 = vmatpush2.xpose.msra.mxu0 0.0
    %353 = vmatprep.subr.mxu0 0.0
    %354 = vmatpush2.xpose.msra.mxu0 0.0
    %355 = vmatprep.subr.mxu0 0.0
    %356 = vmatpush2.xpose.msra.mxu0 0.0
    %357 = vmatprep.subr.mxu0 0.0
    %358 = vmatpush2.xpose.msra.mxu0 0.0
    %359 = vmatprep.subr.mxu0 0.0
    %360 = vmatpush2.xpose.msra.mxu0 0.0
    %361 = vmatprep.subr.mxu0 0.0
    %362 = vmatpush2.xpose.msra.mxu0 0.0
    %363 = vmatprep.subr.mxu0 0.0
    %364 = vmatpush2.xpose.msra.mxu0 0.0
    %365 = vmatprep.subr.mxu0 0.0
    %366 = vmatpush2.xpose.msra.mxu0 0.0
    %367 = vmatprep.subr.mxu0 0.0
    %368 = vmatpush2.xpose.msra.mxu0 0.0
    %369 = vmatprep.subr.mxu0 0.0
    %370 = vmatpush2.xpose.msra.mxu0 0.0
    %371 = vmatprep.mubr.f32.mxu0 0.0
    %372 = vmatmul.mubr.f32.gmra.mxu0 %v306
    %v373 = vpop.f32.mrf.mxu0
    %v374 = vadd.f32 0.0, %v373
    %v375 = vpop.f32.mrf.mxu0
    %376 = vdwg.mxu0
    %p377 = scmp.eq.s32.totalorder 0, 0
    // Predicated region
    $region30: #{tpu_custom_call.1} parent=1 // pred_check
      %p378 = pneg %p377
    $region31: #{tpu_custom_call.1} parent=1 // pred_check_branch
      %380 = sbr.rel (%p378) target = $region33
    $region32: #{tpu_custom_call.1} parent=1 // pred_region
      %381 = vst [vmem:[#allocation2] sm:$0xff] %v374
    $region33: #{tpu_custom_call.1} parent=1 // pred_fallthru
      _
    %p382 = scmp.gt.s32.totalorder 0, 0
    // Predicated region
    $region34: #{tpu_custom_call.1} parent=1 // pred_check
      %p383 = pneg %p382
    $region35: #{tpu_custom_call.1} parent=1 // pred_check_branch
      %385 = sbr.rel (%p383) target = $region37
    $region36: #{tpu_custom_call.1} parent=1 // pred_region
      %v386 = vld [vmem:[#allocation2] sm:$0xff]
      %v387 = vadd.f32 %v386, %v374
      %388 = vst [vmem:[#allocation2] sm:$0xff] %v387
    $region37: #{tpu_custom_call.1} parent=1 // pred_fallthru
      _
    // Predicated region
    $region38: #{tpu_custom_call.1} parent=1 // pred_check
      %p389 = pneg %p377
    $region39: #{tpu_custom_call.1} parent=1 // pred_check_branch
      %391 = sbr.rel (%p389) target = $region41
    $region40: #{tpu_custom_call.1} parent=1 // pred_region
      %v392 = vld [vmem:[#allocation2] sm:$0xff]
      %v393 = vld [vmem:[%s4] sm:$0x1]
      %v395 = vlaneseq
      %v396 = vshrl.u32 %v395, 7
      %v397 = vsub.s32 0, %v396
      %v398 = vrot.slane %v393, %v397
      %v400 = vadd.f32 %v392, %v398
      %401 = vst [vmem:[#allocation6] sm:$0xff] %v400
    $region41: #{tpu_custom_call.1} parent=1 // pred_fallthru
      _
    // Predicated region
    $region42: #{tpu_custom_call.1} parent=1 // pred_check
      _
    $region43: #{tpu_custom_call.1} parent=1 // pred_check_branch
      %403 = sbr.rel (0) target = $region45
    $region44: #{tpu_custom_call.1} parent=1 // pred_region
      %s405 = ssub.s32 128, 128
      %406 = vsyncadd [#allocation5], %s405
      %s408 = sshll.u32 [#allocation6], 4
      %s409 = int_to_ptr.vmem [resolvable:$true] %s408
      %411 = dma.vmem_to_hbm [thread:$0]  %s409, 128, %s6, [#allocation5]
    $region45: #{tpu_custom_call.1} parent=1 // pred_fallthru
      _
    // Predicated region
    $region46: #{tpu_custom_call.1} parent=1 // pred_check
      _
    $region47: #{tpu_custom_call.1} parent=1 // pred_check_branch
      %413 = sbr.rel (0) target = $region49
    $region48: #{tpu_custom_call.1} parent=1 // pred_region
      %414 = dma.done [#allocation5], 128
    $region49: #{tpu_custom_call.1} parent=1 // pred_fallthru
      _
    %415 = vsyncpa [#allocation4], 1
    %416 = vsyncpa [#allocation5], 1

</llo_original>
